<compile_context>
chip_gen: v7x
topology: tpu7x:2x2x1
jax: 0.10.0
libtpu: 0.0.40
codegen_flags: <defaults>
</compile_context>

<pallas_src>
import jax
import jax.numpy as jnp
from jax import lax
from jax.experimental import pallas as pl
from jax.experimental.pallas import tpu as pltpu
import numpy as np

EPS = 1e-5  # PyTorch BatchNorm default


# ----------------------------------------------------------------------------
# Fused kernel: conditioning MLPs + batch-norm (no affine) + modulation
#   One grid step handles one channel tile.
# ----------------------------------------------------------------------------
def affine_fused_kernel(y_ref, w1_ref, b1_ref, w2g_ref, w2b_ref,
                        b2g_ref, b2b_ref, x_ref, mask_ref, o_ref):
    nb, ct, hw = x_ref.shape                 # [N, C_tile, HW]
    hid = w2g_ref.shape[1]

    # ---- merged conditioning MLP, first layer (bf16 on the MXU, f32 accum) ----
    h = jnp.dot(y_ref[...], w1_ref[...], preferred_element_type=jnp.float32)
    h = jnp.maximum(h + b1_ref[...], 0.0)    # [N, 2*HID] f32
    hg = h[:, :hid]                          # hidden for the gamma branch
    hb = h[:, hid:]                          # hidden for the beta  branch

    # second-layer weights for THIS channel tile (channels on sublanes)
    w2g = w2g_ref[...].astype(jnp.float32)   # [Ct, HID]
    w2b = w2b_ref[...].astype(jnp.float32)

    # ---- per-channel BN statistics over (N, HW): single pass (sum, sum-sq) ----
    cnt = jnp.float32(nb * hw)
    s = jnp.zeros((ct, 1), jnp.float32)
    ss = jnp.zeros((ct, 1), jnp.float32)
    for n in range(nb):                      # nb is small and static
        xn = x_ref[n]                        # [Ct, HW]
        s = s + jnp.sum(xn, axis=1, keepdims=True)
        ss = ss + jnp.sum(xn * xn, axis=1, keepdims=True)
    mean = s / cnt                           # [Ct, 1]
    var = jnp.maximum(ss / cnt - mean * mean, 0.0)
    inv = lax.rsqrt(var + EPS)               # [Ct, 1]

    # ---- modulation, one batch element at a time (all 2D, lane-dense) ----
    for n in range(nb):
        # Second MLP layer as a VPU row-broadcast multiply + lane reduction:
        # gamma_n[c] = sum_k w2g[c, k] * hg[n, k] + b2g[c].  This lands gamma/beta
        # directly in [Ct, 1] sublane orientation, so no transpose/reshape and no
        # [N, C, 1] HBM arrays are needed.
        hg_n = hg[n:n + 1, :]                                                  # [1, HID]
        hb_n = hb[n:n + 1, :]
        gamma_n = jnp.sum(w2g * hg_n, axis=1, keepdims=True) + b2g_ref[...]    # [Ct, 1]
        beta_n = jnp.sum(w2b * hb_n, axis=1, keepdims=True) + b2b_ref[...]     # [Ct, 1]

        m_n = mask_ref[n:n + 1, :]                                             # [1, HW]
        x_hat = (x_ref[n] - mean) * inv                                        # [Ct, HW]
        o_ref[n] = ((gamma_n * m_n + 1.0) * x_hat + beta_n * m_n).astype(o_ref.dtype)


# ----------------------------------------------------------------------------
# Wrapper
# ----------------------------------------------------------------------------
def _pack_params(params):
    """Merge / re-layout the two MLPs for the fused kernel.

    Stored params use [in, out] weight layout.  The kernel wants:
      w1  : [E, 2*HID] bf16  (fc_gamma.linear1 || fc_beta.linear1 -> one wide matmul)
      b1  : [1, 2*HID] f32
      w2g : [C, HID]   bf16  (channels on sublanes; tiled over C by the grid)
      w2b : [C, HID]   bf16
      b2g : [C, 1]     f32
      b2b : [C, 1]     f32
    """
    w1 = jnp.concatenate([params["w1g"], params["w1b"]], axis=1).astype(jnp.bfloat16)
    b1 = jnp.concatenate([params["b1g"], params["b1b"]], axis=1).astype(jnp.float32)
    w2g = params["w2g"].T.astype(jnp.bfloat16)
    w2b = params["w2b"].T.astype(jnp.bfloat16)
    b2g = params["b2g"].T.astype(jnp.float32)
    b2b = params["b2b"].T.astype(jnp.float32)
    return w1, b1, w2g, w2b, b2g, b2b


def _choose_c_tile(n, c, hw):
    """Largest channel tile whose double-buffered (x + out) blocks stay under a
    VMEM budget that is safe on v7x (64 MiB physical / 32 MiB scoped default)."""
    budget = 16 * 1024 * 1024

    def buffered_bytes(ct):
        return 2 * 2 * n * ct * hw * 4       # (x tile + out tile) * double buffer, f32

    if c % 8 != 0:                           # sublane dim must be a multiple of 8
        return c                             # or the full extent -> take all of C
    ct = c
    while ct % 2 == 0 and (ct // 2) % 8 == 0 and buffered_bytes(ct) > budget:
        ct //= 2
    return ct


@jax.jit
def affine_forward(x, y, fusion_mask, params):
    """x: [N,C,H,W] f32, y: [N,E] f32, fusion_mask: [N,1,H,W] f32."""
    N, C, H, W = x.shape
    HW = H * W
    E = y.shape[1]
    HID = params["w1g"].shape[1]

    w1, b1, w2g, w2b, b2g, b2b = _pack_params(params)
    y_bf = y.astype(jnp.bfloat16)
    x3 = x.reshape(N, C, HW)                 # HW (multiple of 128) on the lane axis
    m2 = fusion_mask.reshape(N, HW)          # lane-dense mask (no [N,1,HW] layout)

    c_tile = _choose_c_tile(N, C, HW)
    grid = (C // c_tile,)

    out3 = pl.pallas_call(
        affine_fused_kernel,
        out_shape=jax.ShapeDtypeStruct((N, C, HW), x.dtype),
        grid_spec=pltpu.PrefetchScalarGridSpec(
            num_scalar_prefetch=0,
            grid=grid,
            in_specs=[
                pl.BlockSpec((N, E), lambda c: (0, 0)),              # y (bf16)
                pl.BlockSpec((E, 2 * HID), lambda c: (0, 0)),        # merged w1 (bf16)
                pl.BlockSpec((1, 2 * HID), lambda c: (0, 0)),        # merged b1
                pl.BlockSpec((c_tile, HID), lambda c: (c, 0)),       # w2_gamma tile
                pl.BlockSpec((c_tile, HID), lambda c: (c, 0)),       # w2_beta  tile
                pl.BlockSpec((c_tile, 1), lambda c: (c, 0)),         # b2_gamma tile
                pl.BlockSpec((c_tile, 1), lambda c: (c, 0)),         # b2_beta  tile
                pl.BlockSpec((N, c_tile, HW), lambda c: (0, c, 0)),  # x tile
                pl.BlockSpec((N, HW), lambda c: (0, 0)),             # fusion mask
            ],
            out_specs=pl.BlockSpec((N, c_tile, HW), lambda c: (0, c, 0)),
        ),
        compiler_params=pltpu.CompilerParams(
            dimension_semantics=("parallel",),   # channel tiles are independent (v7x: 2 TCs)
            vmem_limit_bytes=32 * 1024 * 1024,
        ),
    )(y_bf, w1, b1, w2g, w2b, b2g, b2b, x3, m2)

    return out3.reshape(N, C, H, W)


# ----------------------------------------------------------------------------
# Pure-JAX reference (for correctness check).  MLP weights / y are quantized to
# bf16 exactly like the kernel stores them (f32 accumulation), so the comparison
# isolates kernel correctness from the intentional dtype policy.
# ----------------------------------------------------------------------------
def reference_forward(x, y, fusion_mask, params):
    def mlp(y, w1, b1, w2, b2):
        h = jnp.dot(y.astype(jnp.bfloat16), w1.astype(jnp.bfloat16),
                    preferred_element_type=jnp.float32) + b1
        h = jnp.maximum(h, 0.0)
        w2q = w2.astype(jnp.bfloat16).astype(jnp.float32)
        return jnp.dot(h, w2q, preferred_element_type=jnp.float32) + b2

    gamma = mlp(y, params["w1g"], params["b1g"], params["w2g"], params["b2g"])
    beta = mlp(y, params["w1b"], params["b1b"], params["w2b"], params["b2b"])

    mean = jnp.mean(x, axis=(0, 2, 3), keepdims=True)
    var = jnp.mean((x - mean) ** 2, axis=(0, 2, 3), keepdims=True)
    x_norm = (x - mean) / jnp.sqrt(var + EPS)

    w = gamma[:, :, None, None] * fusion_mask + 1.0
    b = beta[:, :, None, None] * fusion_mask
    return w * x_norm + b


# ----------------------------------------------------------------------------
if __name__ == "__main__":
    # Small shapes consistent with the module
    N, C, H, W = 2, 4, 16, 16          # num_features = 4
    E, HID = 512, 256                  # sec_emb_len = 512, hidden = 256

    key = jax.random.PRNGKey(0)
    k = jax.random.split(key, 12)
    scale = 0.05

    params = {
        # fc_gamma: Linear(E,256) -> ReLU -> Linear(256,C)
        # stored transposed ([in, out]) relative to PyTorch's [out, in]
        "w1g": jax.random.normal(k[0], (E, HID), jnp.float32) * scale,
        "b1g": jax.random.normal(k[1], (1, HID), jnp.float32) * scale,
        "w2g": jax.random.normal(k[2], (HID, C), jnp.float32) * scale,
        "b2g": jax.random.normal(k[3], (1, C), jnp.float32) * scale,
        # fc_beta
        "w1b": jax.random.normal(k[4], (E, HID), jnp.float32) * scale,
        "b1b": jax.random.normal(k[5], (1, HID), jnp.float32) * scale,
        "w2b": jax.random.normal(k[6], (HID, C), jnp.float32) * scale,
        "b2b": jax.random.normal(k[7], (1, C), jnp.float32) * scale,
    }

    x = jax.random.normal(k[8], (N, C, H, W), jnp.float32)
    y = jax.random.normal(k[9], (N, E), jnp.float32)
    fusion_mask = jax.random.uniform(k[10], (N, 1, H, W), jnp.float32)

    out = affine_forward(x, y, fusion_mask, params)
    out = jax.block_until_ready(out)

    ref = jax.block_until_ready(reference_forward(x, y, fusion_mask, params))

    np.testing.assert_allclose(np.asarray(out), np.asarray(ref),
                               rtol=1e-3, atol=1e-3)
    assert out.shape == (N, C, H, W)

    print("KERNEL_OK")
</pallas_src>

<mosaic_0001>
module attributes {stable_mosaic.version = 11 : i64} {
  func.func @affine_fused_kernel(%arg0: i32, %arg1: memref<2x512xbf16, #tpu.memory_space<vmem>>, %arg2: memref<512x512xbf16, #tpu.memory_space<vmem>>, %arg3: memref<1x512xf32, #tpu.memory_space<vmem>>, %arg4: memref<4x256xbf16, #tpu.memory_space<vmem>>, %arg5: memref<4x256xbf16, #tpu.memory_space<vmem>>, %arg6: memref<4x1xf32, #tpu.memory_space<vmem>>, %arg7: memref<4x1xf32, #tpu.memory_space<vmem>>, %arg8: memref<2x4x256xf32, #tpu.memory_space<vmem>>, %arg9: memref<2x256xf32, #tpu.memory_space<vmem>>, %arg10: memref<2x4x256xf32, #tpu.memory_space<vmem>>) attributes {dimension_semantics = [#tpu.dimension_semantics<parallel>], iteration_bounds = array<i64: 1>, scalar_prefetch = 0 : i64, scratch_operands = 0 : i64, tpu.core_type = #tpu.core_type<tc>, window_params = [{pipeline_mode = #tpu.pipeline_mode<synchronous>, transform_indices = @transform_0, window_bounds = array<i64: 2, 512>}, {pipeline_mode = #tpu.pipeline_mode<synchronous>, transform_indices = @transform_1, window_bounds = array<i64: 512, 512>}, {pipeline_mode = #tpu.pipeline_mode<synchronous>, transform_indices = @transform_2, window_bounds = array<i64: 1, 512>}, {transform_indices = @transform_3, window_bounds = array<i64: 4, 256>}, {transform_indices = @transform_4, window_bounds = array<i64: 4, 256>}, {transform_indices = @transform_5, window_bounds = array<i64: 4, 1>}, {transform_indices = @transform_6, window_bounds = array<i64: 4, 1>}, {transform_indices = @transform_7, window_bounds = array<i64: 2, 4, 256>}, {pipeline_mode = #tpu.pipeline_mode<synchronous>, transform_indices = @transform_8, window_bounds = array<i64: 2, 256>}, {transform_indices = @transform_9, window_bounds = array<i64: 2, 4, 256>}]} {
    %c0 = arith.constant 0 : index
    %c0_0 = arith.constant 0 : index
    %0 = vector.load %arg1[%c0, %c0_0] : memref<2x512xbf16, #tpu.memory_space<vmem>>, vector<2x512xbf16>
    %c0_1 = arith.constant 0 : index
    %c0_2 = arith.constant 0 : index
    %1 = vector.load %arg2[%c0_1, %c0_2] : memref<512x512xbf16, #tpu.memory_space<vmem>>, vector<512x512xbf16>
    %cst = arith.constant dense<0.000000e+00> : vector<2x512xf32>
    %2 = tpu.matmul %0, %1, %cst {dimension_numbers = #tpu.dot_dimension_numbers<[1], [0], [0], [1], [0, 0, 1, 1], [], []>} : vector<2x512xbf16>, vector<512x512xbf16>, vector<2x512xf32> -> vector<2x512xf32>
    %c0_3 = arith.constant 0 : index
    %c0_4 = arith.constant 0 : index
    %3 = vector.load %arg3[%c0_3, %c0_4] : memref<1x512xf32, #tpu.memory_space<vmem>>, vector<1x512xf32>
    %4 = vector.broadcast %3 : vector<1x512xf32> to vector<2x512xf32>
    %5 = arith.addf %2, %4 : vector<2x512xf32>
    %cst_5 = arith.constant 0.000000e+00 : f32
    %6 = vector.broadcast %cst_5 : f32 to vector<2x512xf32>
    %7 = arith.maximumf %5, %6 : vector<2x512xf32>
    %8 = vector.extract_strided_slice %7 {offsets = [0, 0], sizes = [2, 256], strides = [1, 1]} : vector<2x512xf32> to vector<2x256xf32>
    %9 = vector.extract_strided_slice %7 {offsets = [0, 256], sizes = [2, 256], strides = [1, 1]} : vector<2x512xf32> to vector<2x256xf32>
    %c0_6 = arith.constant 0 : index
    %c0_7 = arith.constant 0 : index
    %10 = vector.load %arg4[%c0_6, %c0_7] : memref<4x256xbf16, #tpu.memory_space<vmem>>, vector<4x256xbf16>
    %11 = arith.extf %10 : vector<4x256xbf16> to vector<4x256xf32>
    %c0_8 = arith.constant 0 : index
    %c0_9 = arith.constant 0 : index
    %12 = vector.load %arg5[%c0_8, %c0_9] : memref<4x256xbf16, #tpu.memory_space<vmem>>, vector<4x256xbf16>
    %13 = arith.extf %12 : vector<4x256xbf16> to vector<4x256xf32>
    %cst_10 = arith.constant 0.000000e+00 : f32
    %14 = vector.broadcast %cst_10 : f32 to vector<4x1xf32>
    %cst_11 = arith.constant 0.000000e+00 : f32
    %15 = vector.broadcast %cst_11 : f32 to vector<4x1xf32>
    %c0_12 = arith.constant 0 : index
    %c0_13 = arith.constant 0 : index
    %c0_14 = arith.constant 0 : index
    %16 = vector.load %arg8[%c0_12, %c0_13, %c0_14] : memref<2x4x256xf32, #tpu.memory_space<vmem>>, vector<1x4x256xf32>
    %17 = vector.shape_cast %16 : vector<1x4x256xf32> to vector<4x256xf32>
    %cst_15 = arith.constant dense<0.000000e+00> : vector<4xf32>
    %18 = vector.multi_reduction <add>, %17, %cst_15 [1] : vector<4x256xf32> to vector<4xf32>
    %19 = vector.shape_cast %18 : vector<4xf32> to vector<4x1xf32>
    %20 = arith.addf %14, %19 : vector<4x1xf32>
    %21 = arith.mulf %17, %17 : vector<4x256xf32>
    %cst_16 = arith.constant dense<0.000000e+00> : vector<4xf32>
    %22 = vector.multi_reduction <add>, %21, %cst_16 [1] : vector<4x256xf32> to vector<4xf32>
    %23 = vector.shape_cast %22 : vector<4xf32> to vector<4x1xf32>
    %24 = arith.addf %15, %23 : vector<4x1xf32>
    %c1 = arith.constant 1 : index
    %c0_17 = arith.constant 0 : index
    %c0_18 = arith.constant 0 : index
    %25 = vector.load %arg8[%c1, %c0_17, %c0_18] : memref<2x4x256xf32, #tpu.memory_space<vmem>>, vector<1x4x256xf32>
    %26 = vector.shape_cast %25 : vector<1x4x256xf32> to vector<4x256xf32>
    %cst_19 = arith.constant dense<0.000000e+00> : vector<4xf32>
    %27 = vector.multi_reduction <add>, %26, %cst_19 [1] : vector<4x256xf32> to vector<4xf32>
    %28 = vector.shape_cast %27 : vector<4xf32> to vector<4x1xf32>
    %29 = arith.addf %20, %28 : vector<4x1xf32>
    %30 = arith.mulf %26, %26 : vector<4x256xf32>
    %cst_20 = arith.constant dense<0.000000e+00> : vector<4xf32>
    %31 = vector.multi_reduction <add>, %30, %cst_20 [1] : vector<4x256xf32> to vector<4xf32>
    %32 = vector.shape_cast %31 : vector<4xf32> to vector<4x1xf32>
    %33 = arith.addf %24, %32 : vector<4x1xf32>
    %cst_21 = arith.constant 5.120000e+02 : f32
    %34 = vector.broadcast %cst_21 : f32 to vector<4x1xf32>
    %35 = arith.divf %29, %34 : vector<4x1xf32>
    %cst_22 = arith.constant 5.120000e+02 : f32
    %36 = vector.broadcast %cst_22 : f32 to vector<4x1xf32>
    %37 = arith.divf %33, %36 : vector<4x1xf32>
    %38 = arith.mulf %35, %35 : vector<4x1xf32>
    %39 = arith.subf %37, %38 : vector<4x1xf32>
    %cst_23 = arith.constant 0.000000e+00 : f32
    %40 = vector.broadcast %cst_23 : f32 to vector<4x1xf32>
    %41 = arith.maximumf %39, %40 : vector<4x1xf32>
    %cst_24 = arith.constant 9.99999974E-6 : f32
    %42 = vector.broadcast %cst_24 : f32 to vector<4x1xf32>
    %43 = arith.addf %41, %42 : vector<4x1xf32>
    %44 = math.rsqrt %43 : vector<4x1xf32>
    %45 = vector.extract_strided_slice %8 {offsets = [0, 0], sizes = [1, 256], strides = [1, 1]} : vector<2x256xf32> to vector<1x256xf32>
    %46 = vector.extract_strided_slice %9 {offsets = [0, 0], sizes = [1, 256], strides = [1, 1]} : vector<2x256xf32> to vector<1x256xf32>
    %47 = vector.broadcast %45 : vector<1x256xf32> to vector<4x256xf32>
    %48 = arith.mulf %11, %47 : vector<4x256xf32>
    %cst_25 = arith.constant dense<0.000000e+00> : vector<4xf32>
    %49 = vector.multi_reduction <add>, %48, %cst_25 [1] : vector<4x256xf32> to vector<4xf32>
    %50 = vector.shape_cast %49 : vector<4xf32> to vector<4x1xf32>
    %c0_26 = arith.constant 0 : index
    %c0_27 = arith.constant 0 : index
    %51 = vector.load %arg6[%c0_26, %c0_27] : memref<4x1xf32, #tpu.memory_space<vmem>>, vector<4x1xf32>
    %52 = arith.addf %50, %51 : vector<4x1xf32>
    %53 = vector.broadcast %46 : vector<1x256xf32> to vector<4x256xf32>
    %54 = arith.mulf %13, %53 : vector<4x256xf32>
    %cst_28 = arith.constant dense<0.000000e+00> : vector<4xf32>
    %55 = vector.multi_reduction <add>, %54, %cst_28 [1] : vector<4x256xf32> to vector<4xf32>
    %56 = vector.shape_cast %55 : vector<4xf32> to vector<4x1xf32>
    %c0_29 = arith.constant 0 : index
    %c0_30 = arith.constant 0 : index
    %57 = vector.load %arg7[%c0_29, %c0_30] : memref<4x1xf32, #tpu.memory_space<vmem>>, vector<4x1xf32>
    %58 = arith.addf %56, %57 : vector<4x1xf32>
    %c0_31 = arith.constant 0 : index
    %c0_32 = arith.constant 0 : index
    %59 = vector.load %arg9[%c0_31, %c0_32] : memref<2x256xf32, #tpu.memory_space<vmem>>, vector<1x256xf32>
    %c0_33 = arith.constant 0 : index
    %c0_34 = arith.constant 0 : index
    %c0_35 = arith.constant 0 : index
    %60 = vector.load %arg8[%c0_33, %c0_34, %c0_35] : memref<2x4x256xf32, #tpu.memory_space<vmem>>, vector<1x4x256xf32>
    %61 = vector.shape_cast %60 : vector<1x4x256xf32> to vector<4x256xf32>
    %62 = vector.broadcast %35 : vector<4x1xf32> to vector<4x256xf32>
    %63 = arith.subf %61, %62 : vector<4x256xf32>
    %64 = vector.broadcast %44 : vector<4x1xf32> to vector<4x256xf32>
    %65 = arith.mulf %63, %64 : vector<4x256xf32>
    %66 = vector.broadcast %52 : vector<4x1xf32> to vector<4x256xf32>
    %67 = vector.broadcast %59 : vector<1x256xf32> to vector<4x256xf32>
    %68 = arith.mulf %66, %67 : vector<4x256xf32>
    %cst_36 = arith.constant 1.000000e+00 : f32
    %69 = vector.broadcast %cst_36 : f32 to vector<4x256xf32>
    %70 = arith.addf %68, %69 : vector<4x256xf32>
    %71 = arith.mulf %70, %65 : vector<4x256xf32>
    %72 = vector.broadcast %58 : vector<4x1xf32> to vector<4x256xf32>
    %73 = vector.broadcast %59 : vector<1x256xf32> to vector<4x256xf32>
    %74 = arith.mulf %72, %73 : vector<4x256xf32>
    %75 = arith.addf %71, %74 : vector<4x256xf32>
    %c0_37 = arith.constant 0 : index
    %c0_38 = arith.constant 0 : index
    %c0_39 = arith.constant 0 : index
    %76 = vector.load %arg10[%c0_37, %c0_38, %c0_39] : memref<2x4x256xf32, #tpu.memory_space<vmem>>, vector<1x4x256xf32>
    %77 = vector.shape_cast %76 : vector<1x4x256xf32> to vector<4x256xf32>
    %78 = vector.shape_cast %75 : vector<4x256xf32> to vector<1x4x256xf32>
    tpu.vector_store %arg10[%c0_37, %c0_38, %c0_39], %78 {strides = array<i32>} : memref<2x4x256xf32, #tpu.memory_space<vmem>>, vector<1x4x256xf32>,
    %79 = vector.extract_strided_slice %8 {offsets = [1, 0], sizes = [1, 256], strides = [1, 1]} : vector<2x256xf32> to vector<1x256xf32>
    %80 = vector.extract_strided_slice %9 {offsets = [1, 0], sizes = [1, 256], strides = [1, 1]} : vector<2x256xf32> to vector<1x256xf32>
    %81 = vector.broadcast %79 : vector<1x256xf32> to vector<4x256xf32>
    %82 = arith.mulf %11, %81 : vector<4x256xf32>
    %cst_40 = arith.constant dense<0.000000e+00> : vector<4xf32>
    %83 = vector.multi_reduction <add>, %82, %cst_40 [1] : vector<4x256xf32> to vector<4xf32>
    %84 = vector.shape_cast %83 : vector<4xf32> to vector<4x1xf32>
    %c0_41 = arith.constant 0 : index
    %c0_42 = arith.constant 0 : index
    %85 = vector.load %arg6[%c0_41, %c0_42] : memref<4x1xf32, #tpu.memory_space<vmem>>, vector<4x1xf32>
    %86 = arith.addf %84, %85 : vector<4x1xf32>
    %87 = vector.broadcast %80 : vector<1x256xf32> to vector<4x256xf32>
    %88 = arith.mulf %13, %87 : vector<4x256xf32>
    %cst_43 = arith.constant dense<0.000000e+00> : vector<4xf32>
    %89 = vector.multi_reduction <add>, %88, %cst_43 [1] : vector<4x256xf32> to vector<4xf32>
    %90 = vector.shape_cast %89 : vector<4xf32> to vector<4x1xf32>
    %c0_44 = arith.constant 0 : index
    %c0_45 = arith.constant 0 : index
    %91 = vector.load %arg7[%c0_44, %c0_45] : memref<4x1xf32, #tpu.memory_space<vmem>>, vector<4x1xf32>
    %92 = arith.addf %90, %91 : vector<4x1xf32>
    %c1_46 = arith.constant 1 : index
    %c0_47 = arith.constant 0 : index
    %93 = vector.load %arg9[%c1_46, %c0_47] : memref<2x256xf32, #tpu.memory_space<vmem>>, vector<1x256xf32>
    %c1_48 = arith.constant 1 : index
    %c0_49 = arith.constant 0 : index
    %c0_50 = arith.constant 0 : index
    %94 = vector.load %arg8[%c1_48, %c0_49, %c0_50] : memref<2x4x256xf32, #tpu.memory_space<vmem>>, vector<1x4x256xf32>
    %95 = vector.shape_cast %94 : vector<1x4x256xf32> to vector<4x256xf32>
    %96 = vector.broadcast %35 : vector<4x1xf32> to vector<4x256xf32>
    %97 = arith.subf %95, %96 : vector<4x256xf32>
    %98 = vector.broadcast %44 : vector<4x1xf32> to vector<4x256xf32>
    %99 = arith.mulf %97, %98 : vector<4x256xf32>
    %100 = vector.broadcast %86 : vector<4x1xf32> to vector<4x256xf32>
    %101 = vector.broadcast %93 : vector<1x256xf32> to vector<4x256xf32>
    %102 = arith.mulf %100, %101 : vector<4x256xf32>
    %cst_51 = arith.constant 1.000000e+00 : f32
    %103 = vector.broadcast %cst_51 : f32 to vector<4x256xf32>
    %104 = arith.addf %102, %103 : vector<4x256xf32>
    %105 = arith.mulf %104, %99 : vector<4x256xf32>
    %106 = vector.broadcast %92 : vector<4x1xf32> to vector<4x256xf32>
    %107 = vector.broadcast %93 : vector<1x256xf32> to vector<4x256xf32>
    %108 = arith.mulf %106, %107 : vector<4x256xf32>
    %109 = arith.addf %105, %108 : vector<4x256xf32>
    %c1_52 = arith.constant 1 : index
    %c0_53 = arith.constant 0 : index
    %c0_54 = arith.constant 0 : index
    %110 = vector.load %arg10[%c1_52, %c0_53, %c0_54] : memref<2x4x256xf32, #tpu.memory_space<vmem>>, vector<1x4x256xf32>
    %111 = vector.shape_cast %110 : vector<1x4x256xf32> to vector<4x256xf32>
    %112 = vector.shape_cast %109 : vector<4x256xf32> to vector<1x4x256xf32>
    tpu.vector_store %arg10[%c1_52, %c0_53, %c0_54], %112 {strides = array<i32>} : memref<2x4x256xf32, #tpu.memory_space<vmem>>, vector<1x4x256xf32>,
    return
  }
  func.func @transform_0(%arg0: i32) -> (i32, i32) {
    %c0_i32 = arith.constant 0 : i32
    %c0_i32_0 = arith.constant 0 : i32
    %c0_i32_1 = arith.constant 0 : i32
    return %c0_i32, %c0_i32_0 : i32, i32
  }
  func.func @transform_1(%arg0: i32) -> (i32, i32) {
    %c0_i32 = arith.constant 0 : i32
    %c0_i32_0 = arith.constant 0 : i32
    %c0_i32_1 = arith.constant 0 : i32
    return %c0_i32, %c0_i32_0 : i32, i32
  }
  func.func @transform_2(%arg0: i32) -> (i32, i32) {
    %c0_i32 = arith.constant 0 : i32
    %c0_i32_0 = arith.constant 0 : i32
    %c0_i32_1 = arith.constant 0 : i32
    return %c0_i32, %c0_i32_0 : i32, i32
  }
  func.func @transform_3(%arg0: i32) -> (i32, i32) {
    %c0_i32 = arith.constant 0 : i32
    %c0_i32_0 = arith.constant 0 : i32
    return %arg0, %c0_i32 : i32, i32
  }
  func.func @transform_4(%arg0: i32) -> (i32, i32) {
    %c0_i32 = arith.constant 0 : i32
    %c0_i32_0 = arith.constant 0 : i32
    return %arg0, %c0_i32 : i32, i32
  }
  func.func @transform_5(%arg0: i32) -> (i32, i32) {
    %c0_i32 = arith.constant 0 : i32
    %c0_i32_0 = arith.constant 0 : i32
    return %arg0, %c0_i32 : i32, i32
  }
  func.func @transform_6(%arg0: i32) -> (i32, i32) {
    %c0_i32 = arith.constant 0 : i32
    %c0_i32_0 = arith.constant 0 : i32
    return %arg0, %c0_i32 : i32, i32
  }
  func.func @transform_7(%arg0: i32) -> (i32, i32, i32) {
    %c0_i32 = arith.constant 0 : i32
    %c0_i32_0 = arith.constant 0 : i32
    %c0_i32_1 = arith.constant 0 : i32
    return %c0_i32, %arg0, %c0_i32_0 : i32, i32, i32
  }
  func.func @transform_8(%arg0: i32) -> (i32, i32) {
    %c0_i32 = arith.constant 0 : i32
    %c0_i32_0 = arith.constant 0 : i32
    %c0_i32_1 = arith.constant 0 : i32
    return %c0_i32, %c0_i32_0 : i32, i32
  }
  func.func @transform_9(%arg0: i32) -> (i32, i32, i32) {
    %c0_i32 = arith.constant 0 : i32
    %c0_i32_0 = arith.constant 0 : i32
    %c0_i32_1 = arith.constant 0 : i32
    return %c0_i32, %arg0, %c0_i32_0 : i32, i32, i32
  }
}

</mosaic_0001>

<llo_original>
// kernel: affine_forward.1
$region0: #{affine_forward.1}
  #allocation0 [shape = 'u32[]', space=smem, size = 0x4, offset = 0x4, fixed_abs, tag = 'smem constant byte address 0x4 - core index']
  #allocation1 [shape = 'u32[144,128]{1,0:T(1,128)}', space=vmem, size = 0x12000, scoped, tag = 'internal scratch']
  %s0 = inlined_call_operand.vmem [shape: bf16[2,512], index: 0, kind: input, shape index: {}]
  %s1 = inlined_call_operand.vmem [shape: bf16[512,512], index: 1, kind: input, shape index: {}]
  %s2 = inlined_call_operand.vmem [shape: f32[1,512], index: 2, kind: input, shape index: {}]
  %s3 = inlined_call_operand.vmem [shape: bf16[4,256], index: 3, kind: input, shape index: {}]
  %s4 = inlined_call_operand.vmem [shape: bf16[4,256], index: 4, kind: input, shape index: {}]
  %s5 = inlined_call_operand.vmem [shape: f32[4,1], index: 5, kind: input, shape index: {}]
  %s6 = inlined_call_operand.vmem [shape: f32[4,1], index: 6, kind: input, shape index: {}]
  %s7 = inlined_call_operand.vmem [shape: f32[2,4,256], index: 7, kind: input, shape index: {}]
  %s8 = inlined_call_operand.vmem [shape: f32[2,256], index: 8, kind: input, shape index: {}]
  %s9 = inlined_call_operand.vmem [shape: f32[2,4,256], index: 9, kind: output, shape index: {}]
  %s10 = sld [smem:[#allocation0]]
  $region46: #{affine_forward.1} parent=0
    _
  %s12 = ssub.s32 1, %s10
  %s13 = scalar_select 0, %s12, %s10
  // Predicated region
  $region2: #{affine_forward.1} parent=0 // pred_check
    _
  $region3: #{affine_forward.1} parent=0 // pred_check_branch
    %15 = sbr.rel (0) target = $region5
  $region4: #{affine_forward.1} parent=0 // pred_region
    _
  $region5: #{affine_forward.1} parent=0 // pred_fallthru
    _
  // Predicated region
  $region6: #{affine_forward.1} parent=0 // pred_check
    _
  $region7: #{affine_forward.1} parent=0 // pred_check_branch
    %17 = sbr.rel (0) target = $region9
  $region8: #{affine_forward.1} parent=0 // pred_region
    _
  $region9: #{affine_forward.1} parent=0 // pred_fallthru
    _
  // Predicated region
  $region10: #{affine_forward.1} parent=0 // pred_check
    _
  $region11: #{affine_forward.1} parent=0 // pred_check_branch
    %19 = sbr.rel (0) target = $region13
  $region12: #{affine_forward.1} parent=0 // pred_region
    _
  $region13: #{affine_forward.1} parent=0 // pred_fallthru
    _
  // Predicated region
  $region14: #{affine_forward.1} parent=0 // pred_check
    _
  $region15: #{affine_forward.1} parent=0 // pred_check_branch
    %21 = sbr.rel (0) target = $region17
  $region16: #{affine_forward.1} parent=0 // pred_region
    _
  $region17: #{affine_forward.1} parent=0 // pred_fallthru
    _
  // Predicated region
  $region18: #{affine_forward.1} parent=0 // pred_check
    _
  $region19: #{affine_forward.1} parent=0 // pred_check_branch
    %23 = sbr.rel (0) target = $region21
  $region20: #{affine_forward.1} parent=0 // pred_region
    _
  $region21: #{affine_forward.1} parent=0 // pred_fallthru
    _
  // Predicated region
  $region22: #{affine_forward.1} parent=0 // pred_check
    _
  $region23: #{affine_forward.1} parent=0 // pred_check_branch
    %25 = sbr.rel (0) target = $region25
  $region24: #{affine_forward.1} parent=0 // pred_region
    _
  $region25: #{affine_forward.1} parent=0 // pred_fallthru
    _
  // Predicated region
  $region26: #{affine_forward.1} parent=0 // pred_check
    _
  $region27: #{affine_forward.1} parent=0 // pred_check_branch
    %27 = sbr.rel (0) target = $region29
  $region28: #{affine_forward.1} parent=0 // pred_region
    _
  $region29: #{affine_forward.1} parent=0 // pred_fallthru
    _
  // Predicated region
  $region30: #{affine_forward.1} parent=0 // pred_check
    _
  $region31: #{affine_forward.1} parent=0 // pred_check_branch
    %29 = sbr.rel (0) target = $region33
  $region32: #{affine_forward.1} parent=0 // pred_region
    _
  $region33: #{affine_forward.1} parent=0 // pred_fallthru
    _
  // Predicated region
  $region34: #{affine_forward.1} parent=0 // pred_check
    _
  $region35: #{affine_forward.1} parent=0 // pred_check_branch
    %31 = sbr.rel (0) target = $region37
  $region36: #{affine_forward.1} parent=0 // pred_region
    _
  $region37: #{affine_forward.1} parent=0 // pred_fallthru
    _
  %v32 = vld [vmem:[%s0] sm:$0xf]
  %v33 = vld [vmem:[%s1] sm:$0xff]
  %v34 = vld [vmem:[%s1 + $0x8] sm:$0xff]
  %v35 = vld [vmem:[%s1 + $0x10] sm:$0xff]
  %v36 = vld [vmem:[%s1 + $0x18] sm:$0xff]
  %v37 = vld [vmem:[%s1 + $0x20] sm:$0xff]
  %v38 = vld [vmem:[%s1 + $0x28] sm:$0xff]
  %v39 = vld [vmem:[%s1 + $0x30] sm:$0xff]
  %v40 = vld [vmem:[%s1 + $0x38] sm:$0xff]
  %v41 = vld [vmem:[%s1 + $0x40] sm:$0xff]
  %v42 = vld [vmem:[%s1 + $0x48] sm:$0xff]
  %v43 = vld [vmem:[%s1 + $0x50] sm:$0xff]
  %v44 = vld [vmem:[%s1 + $0x58] sm:$0xff]
  %v45 = vld [vmem:[%s1 + $0x60] sm:$0xff]
  %v46 = vld [vmem:[%s1 + $0x68] sm:$0xff]
  %v47 = vld [vmem:[%s1 + $0x70] sm:$0xff]
  %v48 = vld [vmem:[%s1 + $0x78] sm:$0xff]
  %v49 = vld [vmem:[%s1 + $0x80] sm:$0xff]
  %v50 = vld [vmem:[%s1 + $0x88] sm:$0xff]
  %v51 = vld [vmem:[%s1 + $0x90] sm:$0xff]
  %v52 = vld [vmem:[%s1 + $0x98] sm:$0xff]
  %v53 = vld [vmem:[%s1 + $0xa0] sm:$0xff]
  %v54 = vld [vmem:[%s1 + $0xa8] sm:$0xff]
  %v55 = vld [vmem:[%s1 + $0xb0] sm:$0xff]
  %v56 = vld [vmem:[%s1 + $0xb8] sm:$0xff]
  %v57 = vld [vmem:[%s1 + $0xc0] sm:$0xff]
  %v58 = vld [vmem:[%s1 + $0xc8] sm:$0xff]
  %v59 = vld [vmem:[%s1 + $0xd0] sm:$0xff]
  %v60 = vld [vmem:[%s1 + $0xd8] sm:$0xff]
  %v61 = vld [vmem:[%s1 + $0xe0] sm:$0xff]
  %v62 = vld [vmem:[%s1 + $0xe8] sm:$0xff]
  %v63 = vld [vmem:[%s1 + $0xf0] sm:$0xff]
  %v64 = vld [vmem:[%s1 + $0xf8] sm:$0xff]
  %v65 = vld [vmem:[%s1 + $0x100] sm:$0xff]
  %v66 = vld [vmem:[%s1 + $0x108] sm:$0xff]
  %v67 = vld [vmem:[%s1 + $0x110] sm:$0xff]
  %v68 = vld [vmem:[%s1 + $0x118] sm:$0xff]
  %v69 = vld [vmem:[%s1 + $0x120] sm:$0xff]
  %v70 = vld [vmem:[%s1 + $0x128] sm:$0xff]
  %v71 = vld [vmem:[%s1 + $0x130] sm:$0xff]
  %v72 = vld [vmem:[%s1 + $0x138] sm:$0xff]
  %v73 = vld [vmem:[%s1 + $0x140] sm:$0xff]
  %v74 = vld [vmem:[%s1 + $0x148] sm:$0xff]
  %v75 = vld [vmem:[%s1 + $0x150] sm:$0xff]
  %v76 = vld [vmem:[%s1 + $0x158] sm:$0xff]
  %v77 = vld [vmem:[%s1 + $0x160] sm:$0xff]
  %v78 = vld [vmem:[%s1 + $0x168] sm:$0xff]
  %v79 = vld [vmem:[%s1 + $0x170] sm:$0xff]
  %v80 = vld [vmem:[%s1 + $0x178] sm:$0xff]
  %v81 = vld [vmem:[%s1 + $0x180] sm:$0xff]
  %v82 = vld [vmem:[%s1 + $0x188] sm:$0xff]
  %v83 = vld [vmem:[%s1 + $0x190] sm:$0xff]
  %v84 = vld [vmem:[%s1 + $0x198] sm:$0xff]
  %v85 = vld [vmem:[%s1 + $0x1a0] sm:$0xff]
  %v86 = vld [vmem:[%s1 + $0x1a8] sm:$0xff]
  %v87 = vld [vmem:[%s1 + $0x1b0] sm:$0xff]
  %v88 = vld [vmem:[%s1 + $0x1b8] sm:$0xff]
  %v89 = vld [vmem:[%s1 + $0x1c0] sm:$0xff]
  %v90 = vld [vmem:[%s1 + $0x1c8] sm:$0xff]
  %v91 = vld [vmem:[%s1 + $0x1d0] sm:$0xff]
  %v92 = vld [vmem:[%s1 + $0x1d8] sm:$0xff]
  %v93 = vld [vmem:[%s1 + $0x1e0] sm:$0xff]
  %v94 = vld [vmem:[%s1 + $0x1e8] sm:$0xff]
  %v95 = vld [vmem:[%s1 + $0x1f0] sm:$0xff]
  %v96 = vld [vmem:[%s1 + $0x1f8] sm:$0xff]
  %v97 = vld [vmem:[%s1 + $0x200] sm:$0xff]
  %v98 = vld [vmem:[%s1 + $0x208] sm:$0xff]
  %v99 = vld [vmem:[%s1 + $0x210] sm:$0xff]
  %v100 = vld [vmem:[%s1 + $0x218] sm:$0xff]
  %v101 = vld [vmem:[%s1 + $0x220] sm:$0xff]
  %v102 = vld [vmem:[%s1 + $0x228] sm:$0xff]
  %v103 = vld [vmem:[%s1 + $0x230] sm:$0xff]
  %v104 = vld [vmem:[%s1 + $0x238] sm:$0xff]
  %v105 = vld [vmem:[%s1 + $0x240] sm:$0xff]
  %v106 = vld [vmem:[%s1 + $0x248] sm:$0xff]
  %v107 = vld [vmem:[%s1 + $0x250] sm:$0xff]
  %v108 = vld [vmem:[%s1 + $0x258] sm:$0xff]
  %v109 = vld [vmem:[%s1 + $0x260] sm:$0xff]
  %v110 = vld [vmem:[%s1 + $0x268] sm:$0xff]
  %v111 = vld [vmem:[%s1 + $0x270] sm:$0xff]
  %v112 = vld [vmem:[%s1 + $0x278] sm:$0xff]
  %v113 = vld [vmem:[%s1 + $0x280] sm:$0xff]
  %v114 = vld [vmem:[%s1 + $0x288] sm:$0xff]
  %v115 = vld [vmem:[%s1 + $0x290] sm:$0xff]
  %v116 = vld [vmem:[%s1 + $0x298] sm:$0xff]
  %v117 = vld [vmem:[%s1 + $0x2a0] sm:$0xff]
  %v118 = vld [vmem:[%s1 + $0x2a8] sm:$0xff]
  %v119 = vld [vmem:[%s1 + $0x2b0] sm:$0xff]
  %v120 = vld [vmem:[%s1 + $0x2b8] sm:$0xff]
  %v121 = vld [vmem:[%s1 + $0x2c0] sm:$0xff]
  %v122 = vld [vmem:[%s1 + $0x2c8] sm:$0xff]
  %v123 = vld [vmem:[%s1 + $0x2d0] sm:$0xff]
  %v124 = vld [vmem:[%s1 + $0x2d8] sm:$0xff]
  %v125 = vld [vmem:[%s1 + $0x2e0] sm:$0xff]
  %v126 = vld [vmem:[%s1 + $0x2e8] sm:$0xff]
  %v127 = vld [vmem:[%s1 + $0x2f0] sm:$0xff]
  %v128 = vld [vmem:[%s1 + $0x2f8] sm:$0xff]
  %v129 = vld [vmem:[%s1 + $0x300] sm:$0xff]
  %v130 = vld [vmem:[%s1 + $0x308] sm:$0xff]
  %v131 = vld [vmem:[%s1 + $0x310] sm:$0xff]
  %v132 = vld [vmem:[%s1 + $0x318] sm:$0xff]
  %v133 = vld [vmem:[%s1 + $0x320] sm:$0xff]
  %v134 = vld [vmem:[%s1 + $0x328] sm:$0xff]
  %v135 = vld [vmem:[%s1 + $0x330] sm:$0xff]
  %v136 = vld [vmem:[%s1 + $0x338] sm:$0xff]
  %v137 = vld [vmem:[%s1 + $0x340] sm:$0xff]
  %v138 = vld [vmem:[%s1 + $0x348] sm:$0xff]
  %v139 = vld [vmem:[%s1 + $0x350] sm:$0xff]
  %v140 = vld [vmem:[%s1 + $0x358] sm:$0xff]
  %v141 = vld [vmem:[%s1 + $0x360] sm:$0xff]
  %v142 = vld [vmem:[%s1 + $0x368] sm:$0xff]
  %v143 = vld [vmem:[%s1 + $0x370] sm:$0xff]
  %v144 = vld [vmem:[%s1 + $0x378] sm:$0xff]
  %v145 = vld [vmem:[%s1 + $0x380] sm:$0xff]
  %v146 = vld [vmem:[%s1 + $0x388] sm:$0xff]
  %v147 = vld [vmem:[%s1 + $0x390] sm:$0xff]
  %v148 = vld [vmem:[%s1 + $0x398] sm:$0xff]
  %v149 = vld [vmem:[%s1 + $0x3a0] sm:$0xff]
  %v150 = vld [vmem:[%s1 + $0x3a8] sm:$0xff]
  %v151 = vld [vmem:[%s1 + $0x3b0] sm:$0xff]
  %v152 = vld [vmem:[%s1 + $0x3b8] sm:$0xff]
  %v153 = vld [vmem:[%s1 + $0x3c0] sm:$0xff]
  %v154 = vld [vmem:[%s1 + $0x3c8] sm:$0xff]
  %v155 = vld [vmem:[%s1 + $0x3d0] sm:$0xff]
  %v156 = vld [vmem:[%s1 + $0x3d8] sm:$0xff]
  %v157 = vld [vmem:[%s1 + $0x3e0] sm:$0xff]
  %v158 = vld [vmem:[%s1 + $0x3e8] sm:$0xff]
  %v159 = vld [vmem:[%s1 + $0x3f0] sm:$0xff]
  %v160 = vld [vmem:[%s1 + $0x3f8] sm:$0xff]
  %v161 = vld [vmem:[%s2] sm:$0xf]
  %v163 = vlaneseq
  %v164 = vshrl.u32 %v163, 7
  %v165 = vsub.s32 0, %v164
  %v166 = vrot.slane %v161, %v165
  %v167 = vlaneseq
  %v168 = vshrl.u32 %v167, 7
  %v169 = vsub.s32 1, %v168
  %v170 = vrot.slane %v161, %v169
  %v171 = vlaneseq
  %v172 = vshrl.u32 %v171, 7
  %v173 = vsub.s32 2, %v172
  %v174 = vrot.slane %v161, %v173
  %v175 = vlaneseq
  %v176 = vshrl.u32 %v175, 7
  %v177 = vsub.s32 3, %v176
  %v178 = vrot.slane %v161, %v177
  %v185 = vunpack.c.l.s4 1966171168
  %v186 = vunpack.c.0.s8 %v185
  %v187 = vlaneseq
  %v188 = vshrl.u32 %v187, 7
  %v189 = vsub.s32 %v186, %v188
  %v190 = vrot.slane %v32, %v189
  %v191 = vcombine.high %v190, %v190
  %v193 = vunpack.c.l.s4 1966171168
  %v194 = vunpack.c.0.s8 %v193
  %v195 = vlaneseq
  %v196 = vshrl.u32 %v195, 7
  %v197 = vsub.s32 %v194, %v196
  %v198 = vrot.slane %v190, %v197
  %v200 = vunpack.c.l.s4 1966171168
  %v201 = vunpack.c.0.s8 %v200
  %v202 = vlaneseq
  %v203 = vshrl.u32 %v202, 7
  %v204 = vsub.s32 %v201, %v203
  %v205 = vrot.slane %v191, %v204
  %v206 = vcombine.high %v198, %v198
  %v207 = vcombine.high %v205, %v205
  %v340 = vunpack.c.l.b16 %v33
  %v341 = vunpack.c.h.b16 %v33
  %v342 = vunpack.c.l.b16 %v34
  %v343 = vunpack.c.h.b16 %v34
  %v344 = vunpack.c.l.b16 %v35
  %v345 = vunpack.c.h.b16 %v35
  %v346 = vunpack.c.l.b16 %v36
  %v347 = vunpack.c.h.b16 %v36
  %v348 = vunpack.c.l.b16 %v37
  %v349 = vunpack.c.h.b16 %v37
  %v350 = vunpack.c.l.b16 %v38
  %v351 = vunpack.c.h.b16 %v38
  %v352 = vunpack.c.l.b16 %v39
  %v353 = vunpack.c.h.b16 %v39
  %v354 = vunpack.c.l.b16 %v40
  %v355 = vunpack.c.h.b16 %v40
  %v356 = vunpack.c.l.b16 %v41
  %v357 = vunpack.c.h.b16 %v41
  %v358 = vunpack.c.l.b16 %v42
  %v359 = vunpack.c.h.b16 %v42
  %v360 = vunpack.c.l.b16 %v43
  %v361 = vunpack.c.h.b16 %v43
  %v362 = vunpack.c.l.b16 %v44
  %v363 = vunpack.c.h.b16 %v44
  %v364 = vunpack.c.l.b16 %v45
  %v365 = vunpack.c.h.b16 %v45
  %v366 = vunpack.c.l.b16 %v46
  %v367 = vunpack.c.h.b16 %v46
  %v368 = vunpack.c.l.b16 %v47
  %v369 = vunpack.c.h.b16 %v47
  %v370 = vunpack.c.l.b16 %v48
  %v371 = vunpack.c.h.b16 %v48
  %v372 = vunpack.c.l.b16 %v49
  %v373 = vunpack.c.h.b16 %v49
  %v374 = vunpack.c.l.b16 %v50
  %v375 = vunpack.c.h.b16 %v50
  %v376 = vunpack.c.l.b16 %v51
  %v377 = vunpack.c.h.b16 %v51
  %v378 = vunpack.c.l.b16 %v52
  %v379 = vunpack.c.h.b16 %v52
  %v380 = vunpack.c.l.b16 %v53
  %v381 = vunpack.c.h.b16 %v53
  %v382 = vunpack.c.l.b16 %v54
  %v383 = vunpack.c.h.b16 %v54
  %v384 = vunpack.c.l.b16 %v55
  %v385 = vunpack.c.h.b16 %v55
  %v386 = vunpack.c.l.b16 %v56
  %v387 = vunpack.c.h.b16 %v56
  %v388 = vunpack.c.l.b16 %v57
  %v389 = vunpack.c.h.b16 %v57
  %v390 = vunpack.c.l.b16 %v58
  %v391 = vunpack.c.h.b16 %v58
  %v392 = vunpack.c.l.b16 %v59
  %v393 = vunpack.c.h.b16 %v59
  %v394 = vunpack.c.l.b16 %v60
  %v395 = vunpack.c.h.b16 %v60
  %v396 = vunpack.c.l.b16 %v61
  %v397 = vunpack.c.h.b16 %v61
  %v398 = vunpack.c.l.b16 %v62
  %v399 = vunpack.c.h.b16 %v62
  %v400 = vunpack.c.l.b16 %v63
  %v401 = vunpack.c.h.b16 %v63
  %v402 = vunpack.c.l.b16 %v64
  %v403 = vunpack.c.h.b16 %v64
  %v404 = vunpack.c.l.b16 %v65
  %v405 = vunpack.c.h.b16 %v65
  %v406 = vunpack.c.l.b16 %v66
  %v407 = vunpack.c.h.b16 %v66
  %v408 = vunpack.c.l.b16 %v67
  %v409 = vunpack.c.h.b16 %v67
  %v410 = vunpack.c.l.b16 %v68
  %v411 = vunpack.c.h.b16 %v68
  %v412 = vunpack.c.l.b16 %v69
  %v413 = vunpack.c.h.b16 %v69
  %v414 = vunpack.c.l.b16 %v70
  %v415 = vunpack.c.h.b16 %v70
  %v416 = vunpack.c.l.b16 %v71
  %v417 = vunpack.c.h.b16 %v71
  %v418 = vunpack.c.l.b16 %v72
  %v419 = vunpack.c.h.b16 %v72
  %v420 = vunpack.c.l.b16 %v73
  %v421 = vunpack.c.h.b16 %v73
  %v422 = vunpack.c.l.b16 %v74
  %v423 = vunpack.c.h.b16 %v74
  %v424 = vunpack.c.l.b16 %v75
  %v425 = vunpack.c.h.b16 %v75
  %v426 = vunpack.c.l.b16 %v76
  %v427 = vunpack.c.h.b16 %v76
  %v428 = vunpack.c.l.b16 %v77
  %v429 = vunpack.c.h.b16 %v77
  %v430 = vunpack.c.l.b16 %v78
  %v431 = vunpack.c.h.b16 %v78
  %v432 = vunpack.c.l.b16 %v79
  %v433 = vunpack.c.h.b16 %v79
  %v434 = vunpack.c.l.b16 %v80
  %v435 = vunpack.c.h.b16 %v80
  %v436 = vunpack.c.l.b16 %v81
  %v437 = vunpack.c.h.b16 %v81
  %v438 = vunpack.c.l.b16 %v82
  %v439 = vunpack.c.h.b16 %v82
  %v440 = vunpack.c.l.b16 %v83
  %v441 = vunpack.c.h.b16 %v83
  %v442 = vunpack.c.l.b16 %v84
  %v443 = vunpack.c.h.b16 %v84
  %v444 = vunpack.c.l.b16 %v85
  %v445 = vunpack.c.h.b16 %v85
  %v446 = vunpack.c.l.b16 %v86
  %v447 = vunpack.c.h.b16 %v86
  %v448 = vunpack.c.l.b16 %v87
  %v449 = vunpack.c.h.b16 %v87
  %v450 = vunpack.c.l.b16 %v88
  %v451 = vunpack.c.h.b16 %v88
  %v452 = vunpack.c.l.b16 %v89
  %v453 = vunpack.c.h.b16 %v89
  %v454 = vunpack.c.l.b16 %v90
  %v455 = vunpack.c.h.b16 %v90
  %v456 = vunpack.c.l.b16 %v91
  %v457 = vunpack.c.h.b16 %v91
  %v458 = vunpack.c.l.b16 %v92
  %v459 = vunpack.c.h.b16 %v92
  %v460 = vunpack.c.l.b16 %v93
  %v461 = vunpack.c.h.b16 %v93
  %v462 = vunpack.c.l.b16 %v94
  %v463 = vunpack.c.h.b16 %v94
  %v464 = vunpack.c.l.b16 %v95
  %v465 = vunpack.c.h.b16 %v95
  %v466 = vunpack.c.l.b16 %v96
  %v467 = vunpack.c.h.b16 %v96
  %v468 = vunpack.c.l.b16 %v97
  %v469 = vunpack.c.h.b16 %v97
  %v470 = vunpack.c.l.b16 %v98
  %v471 = vunpack.c.h.b16 %v98
  %v472 = vunpack.c.l.b16 %v99
  %v473 = vunpack.c.h.b16 %v99
  %v474 = vunpack.c.l.b16 %v100
  %v475 = vunpack.c.h.b16 %v100
  %v476 = vunpack.c.l.b16 %v101
  %v477 = vunpack.c.h.b16 %v101
  %v478 = vunpack.c.l.b16 %v102
  %v479 = vunpack.c.h.b16 %v102
  %v480 = vunpack.c.l.b16 %v103
  %v481 = vunpack.c.h.b16 %v103
  %v482 = vunpack.c.l.b16 %v104
  %v483 = vunpack.c.h.b16 %v104
  %v484 = vunpack.c.l.b16 %v105
  %v485 = vunpack.c.h.b16 %v105
  %v486 = vunpack.c.l.b16 %v106
  %v487 = vunpack.c.h.b16 %v106
  %v488 = vunpack.c.l.b16 %v107
  %v489 = vunpack.c.h.b16 %v107
  %v490 = vunpack.c.l.b16 %v108
  %v491 = vunpack.c.h.b16 %v108
  %v492 = vunpack.c.l.b16 %v109
  %v493 = vunpack.c.h.b16 %v109
  %v494 = vunpack.c.l.b16 %v110
  %v495 = vunpack.c.h.b16 %v110
  %v496 = vunpack.c.l.b16 %v111
  %v497 = vunpack.c.h.b16 %v111
  %v498 = vunpack.c.l.b16 %v112
  %v499 = vunpack.c.h.b16 %v112
  %v500 = vunpack.c.l.b16 %v113
  %v501 = vunpack.c.h.b16 %v113
  %v502 = vunpack.c.l.b16 %v114
  %v503 = vunpack.c.h.b16 %v114
  %v504 = vunpack.c.l.b16 %v115
  %v505 = vunpack.c.h.b16 %v115
  %v506 = vunpack.c.l.b16 %v116
  %v507 = vunpack.c.h.b16 %v116
  %v508 = vunpack.c.l.b16 %v117
  %v509 = vunpack.c.h.b16 %v117
  %v510 = vunpack.c.l.b16 %v118
  %v511 = vunpack.c.h.b16 %v118
  %v512 = vunpack.c.l.b16 %v119
  %v513 = vunpack.c.h.b16 %v119
  %v514 = vunpack.c.l.b16 %v120
  %v515 = vunpack.c.h.b16 %v120
  %v516 = vunpack.c.l.b16 %v121
  %v517 = vunpack.c.h.b16 %v121
  %v518 = vunpack.c.l.b16 %v122
  %v519 = vunpack.c.h.b16 %v122
  %v520 = vunpack.c.l.b16 %v123
  %v521 = vunpack.c.h.b16 %v123
  %v522 = vunpack.c.l.b16 %v124
  %v523 = vunpack.c.h.b16 %v124
  %v524 = vunpack.c.l.b16 %v125
  %v525 = vunpack.c.h.b16 %v125
  %v526 = vunpack.c.l.b16 %v126
  %v527 = vunpack.c.h.b16 %v126
  %v528 = vunpack.c.l.b16 %v127
  %v529 = vunpack.c.h.b16 %v127
  %v530 = vunpack.c.l.b16 %v128
  %v531 = vunpack.c.h.b16 %v128
  %v532 = vunpack.c.l.b16 %v129
  %v533 = vunpack.c.h.b16 %v129
  %v534 = vunpack.c.l.b16 %v130
  %v535 = vunpack.c.h.b16 %v130
  %v536 = vunpack.c.l.b16 %v131
  %v537 = vunpack.c.h.b16 %v131
  %v538 = vunpack.c.l.b16 %v132
  %v539 = vunpack.c.h.b16 %v132
  %v540 = vunpack.c.l.b16 %v133
  %v541 = vunpack.c.h.b16 %v133
  %v542 = vunpack.c.l.b16 %v134
  %v543 = vunpack.c.h.b16 %v134
  %v544 = vunpack.c.l.b16 %v135
  %v545 = vunpack.c.h.b16 %v135
  %v546 = vunpack.c.l.b16 %v136
  %v547 = vunpack.c.h.b16 %v136
  %v548 = vunpack.c.l.b16 %v137
  %v549 = vunpack.c.h.b16 %v137
  %v550 = vunpack.c.l.b16 %v138
  %v551 = vunpack.c.h.b16 %v138
  %v552 = vunpack.c.l.b16 %v139
  %v553 = vunpack.c.h.b16 %v139
  %v554 = vunpack.c.l.b16 %v140
  %v555 = vunpack.c.h.b16 %v140
  %v556 = vunpack.c.l.b16 %v141
  %v557 = vunpack.c.h.b16 %v141
  %v558 = vunpack.c.l.b16 %v142
  %v559 = vunpack.c.h.b16 %v142
  %v560 = vunpack.c.l.b16 %v143
  %v561 = vunpack.c.h.b16 %v143
  %v562 = vunpack.c.l.b16 %v144
  %v563 = vunpack.c.h.b16 %v144
  %v564 = vunpack.c.l.b16 %v145
  %v565 = vunpack.c.h.b16 %v145
  %v566 = vunpack.c.l.b16 %v146
  %v567 = vunpack.c.h.b16 %v146
  %v568 = vunpack.c.l.b16 %v147
  %v569 = vunpack.c.h.b16 %v147
  %v570 = vunpack.c.l.b16 %v148
  %v571 = vunpack.c.h.b16 %v148
  %v572 = vunpack.c.l.b16 %v149
  %v573 = vunpack.c.h.b16 %v149
  %v574 = vunpack.c.l.b16 %v150
  %v575 = vunpack.c.h.b16 %v150
  %v576 = vunpack.c.l.b16 %v151
  %v577 = vunpack.c.h.b16 %v151
  %v578 = vunpack.c.l.b16 %v152
  %v579 = vunpack.c.h.b16 %v152
  %v580 = vunpack.c.l.b16 %v153
  %v581 = vunpack.c.h.b16 %v153
  %v582 = vunpack.c.l.b16 %v154
  %v583 = vunpack.c.h.b16 %v154
  %v584 = vunpack.c.l.b16 %v155
  %v585 = vunpack.c.h.b16 %v155
  %v586 = vunpack.c.l.b16 %v156
  %v587 = vunpack.c.h.b16 %v156
  %v588 = vunpack.c.l.b16 %v157
  %v589 = vunpack.c.h.b16 %v157
  %v590 = vunpack.c.l.b16 %v158
  %v591 = vunpack.c.h.b16 %v158
  %v592 = vunpack.c.l.b16 %v159
  %v593 = vunpack.c.h.b16 %v159
  %v594 = vunpack.c.l.b16 %v160
  %v595 = vunpack.c.h.b16 %v160
  %v596 = vpack.c.b16 %v344, %v340
  %v597 = vpack.c.b16 %v345, %v341
  %v598 = vpack.c.b16 %v346, %v342
  %v599 = vpack.c.b16 %v347, %v343
  %v600 = vpack.c.b16 %v352, %v348
  %v601 = vpack.c.b16 %v353, %v349
  %v602 = vpack.c.b16 %v354, %v350
  %v603 = vpack.c.b16 %v355, %v351
  %v604 = vpack.c.b16 %v360, %v356
  %v605 = vpack.c.b16 %v361, %v357
  %v606 = vpack.c.b16 %v362, %v358
  %v607 = vpack.c.b16 %v363, %v359
  %v608 = vpack.c.b16 %v368, %v364
  %v609 = vpack.c.b16 %v369, %v365
  %v610 = vpack.c.b16 %v370, %v366
  %v611 = vpack.c.b16 %v371, %v367
  %v612 = vpack.c.b16 %v376, %v372
  %v613 = vpack.c.b16 %v377, %v373
  %v614 = vpack.c.b16 %v378, %v374
  %v615 = vpack.c.b16 %v379, %v375
  %v616 = vpack.c.b16 %v384, %v380
  %v617 = vpack.c.b16 %v385, %v381
  %v618 = vpack.c.b16 %v386, %v382
  %v619 = vpack.c.b16 %v387, %v383
  %v620 = vpack.c.b16 %v392, %v388
  %v621 = vpack.c.b16 %v393, %v389
  %v622 = vpack.c.b16 %v394, %v390
  %v623 = vpack.c.b16 %v395, %v391
  %v624 = vpack.c.b16 %v400, %v396
  %v625 = vpack.c.b16 %v401, %v397
  %v626 = vpack.c.b16 %v402, %v398
  %v627 = vpack.c.b16 %v403, %v399
  %v628 = vpack.c.b16 %v408, %v404
  %v629 = vpack.c.b16 %v409, %v405
  %v630 = vpack.c.b16 %v410, %v406
  %v631 = vpack.c.b16 %v411, %v407
  %v632 = vpack.c.b16 %v416, %v412
  %v633 = vpack.c.b16 %v417, %v413
  %v634 = vpack.c.b16 %v418, %v414
  %v635 = vpack.c.b16 %v419, %v415
  %v636 = vpack.c.b16 %v424, %v420
  %v637 = vpack.c.b16 %v425, %v421
  %v638 = vpack.c.b16 %v426, %v422
  %v639 = vpack.c.b16 %v427, %v423
  %v640 = vpack.c.b16 %v432, %v428
  %v641 = vpack.c.b16 %v433, %v429
  %v642 = vpack.c.b16 %v434, %v430
  %v643 = vpack.c.b16 %v435, %v431
  %v644 = vpack.c.b16 %v440, %v436
  %v645 = vpack.c.b16 %v441, %v437
  %v646 = vpack.c.b16 %v442, %v438
  %v647 = vpack.c.b16 %v443, %v439
  %v648 = vpack.c.b16 %v448, %v444
  %v649 = vpack.c.b16 %v449, %v445
  %v650 = vpack.c.b16 %v450, %v446
  %v651 = vpack.c.b16 %v451, %v447
  %v652 = vpack.c.b16 %v456, %v452
  %v653 = vpack.c.b16 %v457, %v453
  %v654 = vpack.c.b16 %v458, %v454
  %v655 = vpack.c.b16 %v459, %v455
  %v656 = vpack.c.b16 %v464, %v460
  %v657 = vpack.c.b16 %v465, %v461
  %v658 = vpack.c.b16 %v466, %v462
  %v659 = vpack.c.b16 %v467, %v463
  %v660 = vpack.c.b16 %v472, %v468
  %v661 = vpack.c.b16 %v473, %v469
  %v662 = vpack.c.b16 %v474, %v470
  %v663 = vpack.c.b16 %v475, %v471
  %v664 = vpack.c.b16 %v480, %v476
  %v665 = vpack.c.b16 %v481, %v477
  %v666 = vpack.c.b16 %v482, %v478
  %v667 = vpack.c.b16 %v483, %v479
  %v668 = vpack.c.b16 %v488, %v484
  %v669 = vpack.c.b16 %v489, %v485
  %v670 = vpack.c.b16 %v490, %v486
  %v671 = vpack.c.b16 %v491, %v487
  %v672 = vpack.c.b16 %v496, %v492
  %v673 = vpack.c.b16 %v497, %v493
  %v674 = vpack.c.b16 %v498, %v494
  %v675 = vpack.c.b16 %v499, %v495
  %v676 = vpack.c.b16 %v504, %v500
  %v677 = vpack.c.b16 %v505, %v501
  %v678 = vpack.c.b16 %v506, %v502
  %v679 = vpack.c.b16 %v507, %v503
  %v680 = vpack.c.b16 %v512, %v508
  %v681 = vpack.c.b16 %v513, %v509
  %v682 = vpack.c.b16 %v514, %v510
  %v683 = vpack.c.b16 %v515, %v511
  %v684 = vpack.c.b16 %v520, %v516
  %v685 = vpack.c.b16 %v521, %v517
  %v686 = vpack.c.b16 %v522, %v518
  %v687 = vpack.c.b16 %v523, %v519
  %v688 = vpack.c.b16 %v528, %v524
  %v689 = vpack.c.b16 %v529, %v525
  %v690 = vpack.c.b16 %v530, %v526
  %v691 = vpack.c.b16 %v531, %v527
  %v692 = vpack.c.b16 %v536, %v532
  %v693 = vpack.c.b16 %v537, %v533
  %v694 = vpack.c.b16 %v538, %v534
  %v695 = vpack.c.b16 %v539, %v535
  %v696 = vpack.c.b16 %v544, %v540
  %v697 = vpack.c.b16 %v545, %v541
  %v698 = vpack.c.b16 %v546, %v542
  %v699 = vpack.c.b16 %v547, %v543
  %v700 = vpack.c.b16 %v552, %v548
  %v701 = vpack.c.b16 %v553, %v549
  %v702 = vpack.c.b16 %v554, %v550
  %v703 = vpack.c.b16 %v555, %v551
  %v704 = vpack.c.b16 %v560, %v556
  %v705 = vpack.c.b16 %v561, %v557
  %v706 = vpack.c.b16 %v562, %v558
  %v707 = vpack.c.b16 %v563, %v559
  %v708 = vpack.c.b16 %v568, %v564
  %v709 = vpack.c.b16 %v569, %v565
  %v710 = vpack.c.b16 %v570, %v566
  %v711 = vpack.c.b16 %v571, %v567
  %v712 = vpack.c.b16 %v576, %v572
  %v713 = vpack.c.b16 %v577, %v573
  %v714 = vpack.c.b16 %v578, %v574
  %v715 = vpack.c.b16 %v579, %v575
  %v716 = vpack.c.b16 %v584, %v580
  %v717 = vpack.c.b16 %v585, %v581
  %v718 = vpack.c.b16 %v586, %v582
  %v719 = vpack.c.b16 %v587, %v583
  %v720 = vpack.c.b16 %v592, %v588
  %v721 = vpack.c.b16 %v593, %v589
  %v722 = vpack.c.b16 %v594, %v590
  %v723 = vpack.c.b16 %v595, %v591
  %852 = vmatprep.subr.bf16.mxu0 %v597
  %853 = vmatpush1.bf16.msra.mxu0 %v596
  %854 = vmatprep.subr.bf16.mxu0 %v601
  %855 = vmatpush1.bf16.msra.mxu0 %v600
  %856 = vmatprep.subr.bf16.mxu0 %v605
  %857 = vmatpush1.bf16.msra.mxu0 %v604
  %858 = vmatprep.subr.bf16.mxu0 %v609
  %859 = vmatpush1.bf16.msra.mxu0 %v608
  %860 = vmatprep.subr.bf16.mxu0 %v613
  %861 = vmatpush1.bf16.msra.mxu0 %v612
  %862 = vmatprep.subr.bf16.mxu0 %v617
  %863 = vmatpush1.bf16.msra.mxu0 %v616
  %864 = vmatprep.subr.bf16.mxu0 %v621
  %865 = vmatpush1.bf16.msra.mxu0 %v620
  %866 = vmatprep.subr.bf16.mxu0 %v625
  %867 = vmatpush1.bf16.msra.mxu0 %v624
  %868 = vmatprep.subr.bf16.mxu0 %v629
  %869 = vmatpush1.bf16.msra.mxu0 %v628
  %870 = vmatprep.subr.bf16.mxu0 %v633
  %871 = vmatpush1.bf16.msra.mxu0 %v632
  %872 = vmatprep.subr.bf16.mxu0 %v637
  %873 = vmatpush1.bf16.msra.mxu0 %v636
  %874 = vmatprep.subr.bf16.mxu0 %v641
  %875 = vmatpush1.bf16.msra.mxu0 %v640
  %876 = vmatprep.subr.bf16.mxu0 %v645
  %877 = vmatpush1.bf16.msra.mxu0 %v644
  %878 = vmatprep.subr.bf16.mxu0 %v649
  %879 = vmatpush1.bf16.msra.mxu0 %v648
  %880 = vmatprep.subr.bf16.mxu0 %v653
  %881 = vmatpush1.bf16.msra.mxu0 %v652
  %882 = vmatprep.subr.bf16.mxu0 %v657
  %883 = vmatpush1.bf16.msra.mxu0 %v656
  %884 = vmatprep.mubr.bf16.mxu0 %v205
  %885 = vmatmul.mubr.bf16.gmra.mrb[0].mxu0 %v198
  %v886 = vpop.f32.mrb[0].mxu0
  %v887 = vadd.f32 %v166, %v886
  %v888 = vpop.f32.mrb[0].mxu0
  %v889 = vadd.f32 %v170, %v888
  %v890 = vpop.f32.mrb[0].mxu0
  %v891 = vpop.f32.mrb[0].mxu0
  %892 = vdwg.mxu0
  %893 = vmatprep.subr.bf16.mxu0 %v661
  %894 = vmatpush1.bf16.msra.mxu0 %v660
  %895 = vmatprep.subr.bf16.mxu0 %v665
  %896 = vmatpush1.bf16.msra.mxu0 %v664
  %897 = vmatprep.subr.bf16.mxu0 %v669
  %898 = vmatpush1.bf16.msra.mxu0 %v668
  %899 = vmatprep.subr.bf16.mxu0 %v673
  %900 = vmatpush1.bf16.msra.mxu0 %v672
  %901 = vmatprep.subr.bf16.mxu0 %v677
  %902 = vmatpush1.bf16.msra.mxu0 %v676
  %903 = vmatprep.subr.bf16.mxu0 %v681
  %904 = vmatpush1.bf16.msra.mxu0 %v680
  %905 = vmatprep.subr.bf16.mxu0 %v685
  %906 = vmatpush1.bf16.msra.mxu0 %v684
  %907 = vmatprep.subr.bf16.mxu0 %v689
  %908 = vmatpush1.bf16.msra.mxu0 %v688
  %909 = vmatprep.subr.bf16.mxu0 %v693
  %910 = vmatpush1.bf16.msra.mxu0 %v692
  %911 = vmatprep.subr.bf16.mxu0 %v697
  %912 = vmatpush1.bf16.msra.mxu0 %v696
  %913 = vmatprep.subr.bf16.mxu0 %v701
  %914 = vmatpush1.bf16.msra.mxu0 %v700
  %915 = vmatprep.subr.bf16.mxu0 %v705
  %916 = vmatpush1.bf16.msra.mxu0 %v704
  %917 = vmatprep.subr.bf16.mxu0 %v709
  %918 = vmatpush1.bf16.msra.mxu0 %v708
  %919 = vmatprep.subr.bf16.mxu0 %v713
  %920 = vmatpush1.bf16.msra.mxu0 %v712
  %921 = vmatprep.subr.bf16.mxu0 %v717
  %922 = vmatpush1.bf16.msra.mxu0 %v716
  %923 = vmatprep.subr.bf16.mxu0 %v721
  %924 = vmatpush1.bf16.msra.mxu0 %v720
  %925 = vmatprep.mubr.bf16.mxu0 %v207
  %926 = vmatmul.mubr.bf16.gmra.mrb[0].mxu0 %v206
  %v927 = vpop.f32.mrb[0].mxu0
  %v928 = vadd.f32 %v887, %v927
  %v929 = vpop.f32.mrb[0].mxu0
  %v930 = vadd.f32 %v889, %v929
  %v931 = vpop.f32.mrb[0].mxu0
  %v932 = vpop.f32.mrb[0].mxu0
  %933 = vdwg.mxu0
  %934 = vmatprep.subr.bf16.mxu0 %v599
  %935 = vmatpush1.bf16.msra.mxu0 %v598
  %936 = vmatprep.subr.bf16.mxu0 %v603
  %937 = vmatpush1.bf16.msra.mxu0 %v602
  %938 = vmatprep.subr.bf16.mxu0 %v607
  %939 = vmatpush1.bf16.msra.mxu0 %v606
  %940 = vmatprep.subr.bf16.mxu0 %v611
  %941 = vmatpush1.bf16.msra.mxu0 %v610
  %942 = vmatprep.subr.bf16.mxu0 %v615
  %943 = vmatpush1.bf16.msra.mxu0 %v614
  %944 = vmatprep.subr.bf16.mxu0 %v619
  %945 = vmatpush1.bf16.msra.mxu0 %v618
  %946 = vmatprep.subr.bf16.mxu0 %v623
  %947 = vmatpush1.bf16.msra.mxu0 %v622
  %948 = vmatprep.subr.bf16.mxu0 %v627
  %949 = vmatpush1.bf16.msra.mxu0 %v626
  %950 = vmatprep.subr.bf16.mxu0 %v631
  %951 = vmatpush1.bf16.msra.mxu0 %v630
  %952 = vmatprep.subr.bf16.mxu0 %v635
  %953 = vmatpush1.bf16.msra.mxu0 %v634
  %954 = vmatprep.subr.bf16.mxu0 %v639
  %955 = vmatpush1.bf16.msra.mxu0 %v638
  %956 = vmatprep.subr.bf16.mxu0 %v643
  %957 = vmatpush1.bf16.msra.mxu0 %v642
  %958 = vmatprep.subr.bf16.mxu0 %v647
  %959 = vmatpush1.bf16.msra.mxu0 %v646
  %960 = vmatprep.subr.bf16.mxu0 %v651
  %961 = vmatpush1.bf16.msra.mxu0 %v650
  %962 = vmatprep.subr.bf16.mxu0 %v655
  %963 = vmatpush1.bf16.msra.mxu0 %v654
  %964 = vmatprep.subr.bf16.mxu0 %v659
  %965 = vmatpush1.bf16.msra.mxu0 %v658
  %966 = vmatprep.mubr.bf16.mxu0 %v205
  %967 = vmatmul.mubr.bf16.gmra.mrb[0].mxu0 %v198
  %v968 = vpop.f32.mrb[0].mxu0
  %v969 = vadd.f32 %v174, %v968
  %v970 = vpop.f32.mrb[0].mxu0
  %v971 = vadd.f32 %v178, %v970
  %v972 = vpop.f32.mrb[0].mxu0
  %v973 = vpop.f32.mrb[0].mxu0
  %974 = vdwg.mxu0
  %975 = vmatprep.subr.bf16.mxu0 %v663
  %976 = vmatpush1.bf16.msra.mxu0 %v662
  %977 = vmatprep.subr.bf16.mxu0 %v667
  %978 = vmatpush1.bf16.msra.mxu0 %v666
  %979 = vmatprep.subr.bf16.mxu0 %v671
  %980 = vmatpush1.bf16.msra.mxu0 %v670
  %981 = vmatprep.subr.bf16.mxu0 %v675
  %982 = vmatpush1.bf16.msra.mxu0 %v674
  %983 = vmatprep.subr.bf16.mxu0 %v679
  %984 = vmatpush1.bf16.msra.mxu0 %v678
  %985 = vmatprep.subr.bf16.mxu0 %v683
  %986 = vmatpush1.bf16.msra.mxu0 %v682
  %987 = vmatprep.subr.bf16.mxu0 %v687
  %988 = vmatpush1.bf16.msra.mxu0 %v686
  %989 = vmatprep.subr.bf16.mxu0 %v691
  %990 = vmatpush1.bf16.msra.mxu0 %v690
  %991 = vmatprep.subr.bf16.mxu0 %v695
  %992 = vmatpush1.bf16.msra.mxu0 %v694
  %993 = vmatprep.subr.bf16.mxu0 %v699
  %994 = vmatpush1.bf16.msra.mxu0 %v698
  %995 = vmatprep.subr.bf16.mxu0 %v703
  %996 = vmatpush1.bf16.msra.mxu0 %v702
  %997 = vmatprep.subr.bf16.mxu0 %v707
  %998 = vmatpush1.bf16.msra.mxu0 %v706
  %999 = vmatprep.subr.bf16.mxu0 %v711
  %1000 = vmatpush1.bf16.msra.mxu0 %v710
  %1001 = vmatprep.subr.bf16.mxu0 %v715
  %1002 = vmatpush1.bf16.msra.mxu0 %v714
  %1003 = vmatprep.subr.bf16.mxu0 %v719
  %1004 = vmatpush1.bf16.msra.mxu0 %v718
  %1005 = vmatprep.subr.bf16.mxu0 %v723
  %1006 = vmatpush1.bf16.msra.mxu0 %v722
  %1007 = vmatprep.mubr.bf16.mxu0 %v207
  %1008 = vmatmul.mubr.bf16.gmra.mrb[0].mxu0 %v206
  %v1009 = vpop.f32.mrb[0].mxu0
  %v1010 = vadd.f32 %v969, %v1009
  %v1011 = vpop.f32.mrb[0].mxu0
  %v1012 = vadd.f32 %v971, %v1011
  %v1013 = vpop.f32.mrb[0].mxu0
  %v1014 = vpop.f32.mrb[0].mxu0
  %1015 = vdwg.mxu0
  %v1016 = vmax.f32 %v928, 0.0
  %v1017 = vmax.f32 %v930, 0.0
  %v1018 = vmax.f32 %v1010, 0.0
  %v1019 = vmax.f32 %v1012, 0.0
  %v1020 = vld [vmem:[%s3] sm:$0xf]
  %v1021 = vunpack.c.l.bf16 %v1020
  %v1022 = vld [vmem:[%s4] sm:$0xf]
  %v1023 = vunpack.c.l.bf16 %v1022
  %v1024 = vld [vmem:[%s7] sm:$0xff]
  %v1026 = vcombine.high %v1024, %v1024
  %vm1028 = vcmask 1043456
  %v1029 = vsel %vm1028, %v1024, 0.0
  %v1030 = vsel %vm1028, %v1026, 0.0
  %v1031 = vadd.f32 %v1029, %v1030
  %1032 = vadd.xlane.f32.xlu0 %v1031
  %v1033 = vpop.xlane.xlu0 %1032
  %v1034 = vadd.f32 %v1033, 0.0
  %v1035 = vmul.f32 %v1024, %v1024
  %v1037 = vcombine.high %v1035, %v1035
  %v1039 = vsel %vm1028, %v1035, 0.0
  %v1040 = vsel %vm1028, %v1037, 0.0
  %v1041 = vadd.f32 %v1039, %v1040
  %1042 = vadd.xlane.f32.xlu0 %v1041
  %v1043 = vpop.xlane.xlu0 %1042
  %v1044 = vadd.f32 %v1043, 0.0
  %s1045 = scalar_lea.vmem %s7, 8
  %v1046 = vld [vmem:[%s1045] sm:$0xff]
  %v1048 = vcombine.high %v1046, %v1046
  %v1050 = vsel %vm1028, %v1046, 0.0
  %v1051 = vsel %vm1028, %v1048, 0.0
  %v1052 = vadd.f32 %v1050, %v1051
  %1053 = vadd.xlane.f32.xlu0 %v1052
  %v1054 = vpop.xlane.xlu0 %1053
  %v1055 = vadd.f32 %v1034, %v1054
  %v1056 = vmul.f32 %v1046, %v1046
  %v1058 = vcombine.high %v1056, %v1056
  %v1060 = vsel %vm1028, %v1056, 0.0
  %v1061 = vsel %vm1028, %v1058, 0.0
  %v1062 = vadd.f32 %v1060, %v1061
  %1063 = vadd.xlane.f32.xlu0 %v1062
  %v1064 = vpop.xlane.xlu0 %1063
  %v1065 = vadd.f32 %v1044, %v1064
  %v1066 = vrcp.pop 512.0
  %v1067 = vmul.f32 %v1055, %v1066
  %v1068 = vmul.f32 %v1065, %v1066
  %v1069 = vmul.f32 %v1067, %v1067
  %v1070 = vsub.f32 %v1068, %v1069
  %v1071 = vmax.f32 %v1070, 0.0
  %v1072 = vadd.f32 %v1071, 1e-05
  %v1073 = vrsqrt.pop %v1072
  %v1074 = vlaneseq
  %v1075 = vshrl.u32 %v1074, 7
  %v1076 = vsub.s32 0, %v1075
  %v1077 = vrot.slane %v1016, %v1076
  %v1078 = vlaneseq
  %v1079 = vshrl.u32 %v1078, 7
  %v1080 = vsub.s32 0, %v1079
  %v1081 = vrot.slane %v1017, %v1080
  %v1084 = vcombine.low %v1077, %v1081
  %v1086 = vmul.f32 %v1021, %v1084
  %v1088 = vcombine.high %v1086, %v1086
  %v1090 = vsel %vm1028, %v1086, 0.0
  %v1091 = vsel %vm1028, %v1088, 0.0
  %v1092 = vadd.f32 %v1090, %v1091
  %1093 = vadd.xlane.f32.xlu0 %v1092
  %v1094 = vpop.xlane.xlu0 %1093
  %v1095 = vld [vmem:[%s5] sm:$0xf]
  %v1096 = vadd.f32 %v1094, %v1095
  %v1097 = vlaneseq
  %v1098 = vshrl.u32 %v1097, 7
  %v1099 = vsub.s32 0, %v1098
  %v1100 = vrot.slane %v1018, %v1099
  %v1101 = vlaneseq
  %v1102 = vshrl.u32 %v1101, 7
  %v1103 = vsub.s32 0, %v1102
  %v1104 = vrot.slane %v1019, %v1103
  %v1107 = vcombine.low %v1100, %v1104
  %v1109 = vmul.f32 %v1023, %v1107
  %v1111 = vcombine.high %v1109, %v1109
  %v1113 = vsel %vm1028, %v1109, 0.0
  %v1114 = vsel %vm1028, %v1111, 0.0
  %v1115 = vadd.f32 %v1113, %v1114
  %1116 = vadd.xlane.f32.xlu0 %v1115
  %v1117 = vpop.xlane.xlu0 %1116
  %v1118 = vld [vmem:[%s6] sm:$0xf]
  %v1119 = vadd.f32 %v1117, %v1118
  %v1120 = vld [vmem:[%s8] ss:$2 sm:$0x3]
  %v1123 = vunpack.c.l.s4 839922192
  %v1124 = vunpack.c.0.s8 %v1123
  %v1125 = vlaneseq
  %v1126 = vshrl.u32 %v1125, 7
  %v1127 = vsub.s32 %v1124, %v1126
  %v1128 = vrot.slane %v1067, %v1127
  %v1130 = vsub.f32 %v1024, %v1128
  %v1133 = vunpack.c.l.s4 839922192
  %v1134 = vunpack.c.0.s8 %v1133
  %v1135 = vlaneseq
  %v1136 = vshrl.u32 %v1135, 7
  %v1137 = vsub.s32 %v1134, %v1136
  %v1138 = vrot.slane %v1073, %v1137
  %v1140 = vmul.f32 %v1130, %v1138
  %1142 = vset.pattern.permute.xlu0 0
  %1143 = vperm.xlu0 %1142, %v1096
  %v1144 = vpop.permute.xlu0 %1143
  %v1147 = vlaneseq
  %v1148 = vshrl.u32 %v1147, 7
  %v1149 = vsub.s32 0, %v1148
  %v1150 = vrot.slane %v1120, %v1149
  %v1151 = vlaneseq
  %v1152 = vshrl.u32 %v1151, 7
  %v1153 = vsub.s32 1, %v1152
  %v1154 = vrot.slane %v1120, %v1153
  %v1157 = vmul.f32 %v1144, %v1150
  %v1158 = vmul.f32 %v1144, %v1154
  %v1159 = vadd.f32 %v1157, 1.0
  %v1160 = vadd.f32 %v1158, 1.0
  %v1162 = vcombine.high %v1140, %v1140
  %v1164 = vmul.f32 %v1159, %v1140
  %v1165 = vmul.f32 %v1160, %v1162
  %1167 = vset.pattern.permute.xlu0 0
  %1168 = vperm.xlu0 %1167, %v1119
  %v1169 = vpop.permute.xlu0 %1168
  %v1171 = vmul.f32 %v1169, %v1150
  %v1172 = vmul.f32 %v1169, %v1154
  %v1173 = vadd.f32 %v1164, %v1171
  %v1174 = vadd.f32 %v1165, %v1172
  %v1177 = vcombine.low %v1173, %v1174
  %1179 = vst [vmem:[%s9] sm:$0xff] %v1177
  %v1180 = vlaneseq
  %v1181 = vshrl.u32 %v1180, 7
  %v1182 = vsub.s32 1, %v1181
  %v1183 = vrot.slane %v1016, %v1182
  %v1184 = vlaneseq
  %v1185 = vshrl.u32 %v1184, 7
  %v1186 = vsub.s32 1, %v1185
  %v1187 = vrot.slane %v1017, %v1186
  %v1190 = vcombine.low %v1183, %v1187
  %v1192 = vmul.f32 %v1021, %v1190
  %v1194 = vcombine.high %v1192, %v1192
  %v1196 = vsel %vm1028, %v1192, 0.0
  %v1197 = vsel %vm1028, %v1194, 0.0
  %v1198 = vadd.f32 %v1196, %v1197
  %1199 = vadd.xlane.f32.xlu0 %v1198
  %v1200 = vpop.xlane.xlu0 %1199
  %v1201 = vld [vmem:[%s5] sm:$0xf]
  %v1202 = vadd.f32 %v1200, %v1201
  %v1203 = vlaneseq
  %v1204 = vshrl.u32 %v1203, 7
  %v1205 = vsub.s32 1, %v1204
  %v1206 = vrot.slane %v1018, %v1205
  %v1207 = vlaneseq
  %v1208 = vshrl.u32 %v1207, 7
  %v1209 = vsub.s32 1, %v1208
  %v1210 = vrot.slane %v1019, %v1209
  %v1213 = vcombine.low %v1206, %v1210
  %v1215 = vmul.f32 %v1023, %v1213
  %v1217 = vcombine.high %v1215, %v1215
  %v1219 = vsel %vm1028, %v1215, 0.0
  %v1220 = vsel %vm1028, %v1217, 0.0
  %v1221 = vadd.f32 %v1219, %v1220
  %1222 = vadd.xlane.f32.xlu0 %v1221
  %v1223 = vpop.xlane.xlu0 %1222
  %v1224 = vld [vmem:[%s6] sm:$0xf]
  %v1225 = vadd.f32 %v1223, %v1224
  %s1226 = scalar_lea.vmem %s8, 1
  %v1227 = vld [vmem:[%s1226] ss:$2 sm:$0x3]
  %v1228 = vld [vmem:[%s1045] sm:$0xff]
  %v1229 = vsub.f32 %v1228, %v1128
  %v1230 = vmul.f32 %v1229, %v1138
  %1232 = vset.pattern.permute.xlu0 0
  %1233 = vperm.xlu0 %1232, %v1202
  %v1234 = vpop.permute.xlu0 %1233
  %v1237 = vlaneseq
  %v1238 = vshrl.u32 %v1237, 7
  %v1239 = vsub.s32 0, %v1238
  %v1240 = vrot.slane %v1227, %v1239
  %v1241 = vlaneseq
  %v1242 = vshrl.u32 %v1241, 7
  %v1243 = vsub.s32 1, %v1242
  %v1244 = vrot.slane %v1227, %v1243
  %v1247 = vmul.f32 %v1234, %v1240
  %v1248 = vmul.f32 %v1234, %v1244
  %v1249 = vadd.f32 %v1247, 1.0
  %v1250 = vadd.f32 %v1248, 1.0
  %v1252 = vcombine.high %v1230, %v1230
  %v1254 = vmul.f32 %v1249, %v1230
  %v1255 = vmul.f32 %v1250, %v1252
  %1257 = vset.pattern.permute.xlu0 0
  %1258 = vperm.xlu0 %1257, %v1225
  %v1259 = vpop.permute.xlu0 %1258
  %v1261 = vmul.f32 %v1259, %v1240
  %v1262 = vmul.f32 %v1259, %v1244
  %v1263 = vadd.f32 %v1254, %v1261
  %v1264 = vadd.f32 %v1255, %v1262
  %v1267 = vcombine.low %v1263, %v1264
  %s1269 = scalar_lea.vmem %s9, 8
  %1270 = vst [vmem:[%s1269] sm:$0xff] %v1267
  // Predicated region
  $region38: #{affine_forward.1} parent=0 // pred_check
    _
  $region39: #{affine_forward.1} parent=0 // pred_check_branch
    %1272 = sbr.rel (0) target = $region41
  $region40: #{affine_forward.1} parent=0 // pred_region
    _
  $region41: #{affine_forward.1} parent=0 // pred_fallthru
    _
  // Predicated region
  $region42: #{affine_forward.1} parent=0 // pred_check
    _
  $region43: #{affine_forward.1} parent=0 // pred_check_branch
    %1274 = sbr.rel (0) target = $region45
  $region44: #{affine_forward.1} parent=0 // pred_region
    _
  $region45: #{affine_forward.1} parent=0 // pred_fallthru
    _

</llo_original>
